<compile_context>
chip_gen: v5e
topology: v5e:2x2
jax: 0.10.0
libtpu: 0.0.40
codegen_flags: <defaults>
</compile_context>

<pallas_src>
import numpy as np

import jax
import jax.numpy as jnp
from jax.experimental import pallas as pl
from jax.experimental.pallas import tpu as pltpu

# SMPL joint split (indices into the 24-joint axis)
SMPL_DOWN = [0, 1, 2, 4, 5, 7, 8, 10, 11]
SMPL_UP = [3, 6, 9, 12, 13, 14, 15, 16, 17, 18, 19, 20, 21, 22, 23]

JOINT_CHANNEL = 3
N_JOINTS = 24
C_UP = len(SMPL_UP) * JOINT_CHANNEL      # 45
C_DOWN = len(SMPL_DOWN) * JOINT_CHANNEL  # 27
C_CAT = C_UP + C_DOWN                    # 72
EMB = 32          # per-branch VQ embedding width
KCODES = 64       # per-branch codebook size
LANES = 128       # lane-dense channel / code width (>= C_CAT, == 2*KCODES)
H_OFF = 2 * KCODES
ENC_W = 256       # fused encoder RHS: [-2*wenc@cb.T (128) | wenc blkdiag (64) | pad (64)]
ALIGN = 16        # row-tile alignment (bf16 native (16,128) tiling)
MAX_TN = 2048     # row-tile cap (rows per grid step)


def _build_channel_perm():
    """perm[i] = position of ORIGINAL channel i in the concatenated [up|down] order."""
    up_pos = {j: p for p, j in enumerate(SMPL_UP)}
    dn_pos = {j: p for p, j in enumerate(SMPL_DOWN)}
    perm = []
    for j in range(N_JOINTS):
        for c in range(JOINT_CHANNEL):
            if j in up_pos:
                perm.append(JOINT_CHANNEL * up_pos[j] + c)
            else:
                perm.append(C_UP + JOINT_CHANNEL * dn_pos[j] + c)
    return np.asarray(perm, dtype=np.int32)


def _build_up_mask():
    m = np.zeros((C_CAT,), np.float32)
    for j in SMPL_UP:
        m[JOINT_CHANNEL * j:JOINT_CHANNEL * (j + 1)] = 1.0
    return m


_CHANNEL_PERM = _build_channel_perm()
_UP_MASK = _build_up_mask()


def _fused_vq_kernel(x_ref, wcat_ref, cbsq_ref, wdec_ref, xo_ref, commit_ref):
    """One (TN, 128) row tile of the fused up+down VQ-VAE.

    x lanes [0:72] are the original 24x3 joint channels (the up/down split is
    folded into the weights), lanes [72:128] are zero pad.
    Code axis: [0:64] up codebook, [64:128] down codebook.
    h axis (second 128 lanes of y): [0:32] up emb, [32:64] down emb, rest 0.
    """
    x = x_ref[...]                                                 # (TN,128) bf16

    # Single fused encoder matmul: cols [0:128) give -2<h, cb> against both
    # codebooks (scale pre-folded), cols [128:192) give h, [192:256) are pad.
    y = jnp.dot(x, wcat_ref[...], preferred_element_type=jnp.float32)
    scores = y[:, :H_OFF]                                          # (TN,128)
    h = y[:, H_OFF:]                                               # (TN,128)

    # Nearest code per branch: dist_k = ||cb_k||^2 - 2<h, cb_k>.
    dist = scores + cbsq_ref[...]                                  # (TN,128)
    col = jax.lax.broadcasted_iota(jnp.int32, dist.shape, 1)
    is_up = col < KCODES
    inf = jnp.float32(jnp.inf)
    d_up = jnp.where(is_up, dist, inf)
    d_dn = jnp.where(is_up, inf, dist)
    min_up = jnp.min(d_up, axis=-1, keepdims=True)                 # (TN,1)
    min_dn = jnp.min(d_dn, axis=-1, keepdims=True)
    big = jnp.int32(2 * KCODES)
    idx_up = jnp.min(jnp.where(d_up <= min_up, col, big), axis=-1, keepdims=True)
    idx_dn = jnp.min(jnp.where(d_dn <= min_dn, col, big), axis=-1, keepdims=True)
    # Exactly one 1 in [0:64] (up code) and one in [64:128] (down code).
    onehot = jnp.logical_or(col == idx_up, col == idx_dn).astype(jnp.bfloat16)

    # Fused decode (cb @ wdec pre-fused, joint permutation folded into its
    # columns); stored in bf16 to halve output HBM traffic.
    xo_ref[...] = jnp.dot(onehot, wdec_ref[...],
                          preferred_element_type=jnp.float32).astype(xo_ref.dtype)

    # Commitment-loss partial sums via ||h - q||^2 == ||h||^2 + min_dist.
    # h lanes [64:128] are exactly zero, so they add nothing to the down sum.
    h2 = h * h
    elane = jax.lax.broadcasted_iota(jnp.int32, h2.shape, 1)
    s_up = jnp.sum(jnp.where(elane < EMB, h2, 0.0)) + jnp.sum(min_up)
    s_dn = jnp.sum(jnp.where(elane >= EMB, h2, 0.0)) + jnp.sum(min_dn)
    out_lane = jax.lax.broadcasted_iota(jnp.int32, commit_ref.shape, 2)
    commit_ref[...] = jnp.where(out_lane < KCODES, s_up, s_dn)


def _round_up(n, m):
    return ((n + m - 1) // m) * m


def _num_tensorcores():
    # v7x has 2 TensorCores per chip; v5e/v6e have 1.
    try:
        kind = jax.devices()[0].device_kind.lower()
    except Exception:
        return 1
    return 2 if "v7" in kind else 1


def _pick_row_tile(n):
    n_al = _round_up(max(n, ALIGN), ALIGN)
    if _num_tensorcores() >= 2 and n_al >= 2 * ALIGN:
        # >= 2 grid steps so the "parallel" axis feeds both TensorCores.
        return min(MAX_TN, _round_up((n_al + 1) // 2, ALIGN))
    return min(MAX_TN, n_al)


def _fuse_params(params):
    """Pre-fused bf16 operands with the SMPL joint permutation folded in."""
    wenc_u, cb_u, wdec_u = params['up']
    wenc_d, cb_d, wdec_d = params['down']
    f32, bf16 = jnp.float32, jnp.bfloat16

    # Encoder RHS in concatenated (up | down) channel order; -2 folded into
    # the score block so the kernel does dist = scores + ||cb||^2.
    w_enc = jnp.zeros((C_CAT, ENC_W), f32)
    w_enc = w_enc.at[:C_UP, :KCODES].set(-2.0 * (wenc_u @ cb_u.T))
    w_enc = w_enc.at[C_UP:, KCODES:2 * KCODES].set(-2.0 * (wenc_d @ cb_d.T))
    w_enc = w_enc.at[:C_UP, H_OFF:H_OFF + EMB].set(wenc_u)
    w_enc = w_enc.at[C_UP:, H_OFF + EMB:H_OFF + 2 * EMB].set(wenc_d)

    # Decoder (codes -> channels) in concatenated channel order, cb pre-fused.
    w_dec = jnp.zeros((2 * KCODES, C_CAT), f32)
    w_dec = w_dec.at[:KCODES, :C_UP].set(cb_u @ wdec_u)
    w_dec = w_dec.at[KCODES:, C_UP:].set(cb_d @ wdec_d)

    # Fold the SMPL up/down permutation: encoder rows / decoder cols indexed
    # by the ORIGINAL 24x3 channel order, then pad to 128 lanes.
    perm = _CHANNEL_PERM
    w_cat = jnp.zeros((LANES, ENC_W), f32).at[:C_CAT].set(w_enc[perm])
    w_dec_full = jnp.zeros((2 * KCODES, LANES), f32).at[:, :C_CAT].set(w_dec[:, perm])

    cb_sq = jnp.concatenate([jnp.sum(cb_u * cb_u, -1),
                             jnp.sum(cb_d * cb_d, -1)]).reshape(1, 2 * KCODES)

    return w_cat.astype(bf16), cb_sq.astype(f32), w_dec_full.astype(bf16)


def fused_vqvae(x_flat, fused_weights):
    """x_flat: (N, 72) f32 in original joint-channel order.

    Returns (x_out (N, 72) f32 in original order, commit_up, commit_down),
    where commit is mean((h - q)^2) per branch.
    """
    n = x_flat.shape[0]
    tn = _pick_row_tile(n)
    n_pad = _round_up(n, tn)
    num_tiles = n_pad // tn
    w_cat, cb_sq, w_dec = fused_weights

    # Fused cast+pad to a lane-dense, row-padded bf16 slab (single pass).
    x_pad = jax.lax.pad(x_flat.astype(jnp.bfloat16),
                        jnp.array(0, jnp.bfloat16),
                        ((0, n_pad - n, 0), (0, LANES - C_CAT, 0)))

    xo_pad, commit_part = pl.pallas_call(
        _fused_vq_kernel,
        out_shape=(jax.ShapeDtypeStruct((n_pad, LANES), jnp.bfloat16),
                   jax.ShapeDtypeStruct((num_tiles, 8, LANES), jnp.float32)),
        grid=(num_tiles,),
        in_specs=[
            pl.BlockSpec((tn, LANES), lambda i: (i, 0)),            # x tile
            pl.BlockSpec((LANES, ENC_W), lambda i: (0, 0)),         # fused enc RHS
            pl.BlockSpec((1, 2 * KCODES), lambda i: (0, 0)),        # ||cb||^2
            pl.BlockSpec((2 * KCODES, LANES), lambda i: (0, 0)),    # fused dec
        ],
        out_specs=(
            pl.BlockSpec((tn, LANES), lambda i: (i, 0)),
            pl.BlockSpec((1, 8, LANES), lambda i: (i, 0, 0)),
        ),
        compiler_params=pltpu.CompilerParams(
            dimension_semantics=("parallel",)),
    )(x_pad, w_cat, cb_sq, w_dec)

    # Padded (all-zero) rows contribute exactly min_k ||cb_k||^2 per branch to
    # the in-kernel sums; subtract that here instead of masking in every tile.
    pad_rows = jnp.float32(n_pad - n)
    denom = jnp.float32(n * EMB)
    commit_up = (jnp.sum(commit_part[:, 0, 0])
                 - pad_rows * jnp.min(cb_sq[0, :KCODES])) / denom
    commit_down = (jnp.sum(commit_part[:, 0, KCODES])
                   - pad_rows * jnp.min(cb_sq[0, KCODES:])) / denom
    return xo_pad[:n, :C_CAT].astype(jnp.float32), commit_up, commit_down


def branch_losses(x, x_out, chan_mask, n_chan, commit):
    """Per-branch losses on the full (B, T, 72) tensors via a channel mask."""
    b, t, _ = x.shape
    recons = jnp.sum(((x_out - x) ** 2) * chan_mask) / (b * t * n_chan)
    vel_t = x[:, 1:] - x[:, :-1]
    vel_o = x_out[:, 1:] - x_out[:, :-1]
    velocity = jnp.sum(((vel_o - vel_t) ** 2) * chan_mask) / (b * (t - 1) * n_chan)
    acc_t = vel_t[:, 1:] - vel_t[:, :-1]
    acc_o = vel_o[:, 1:] - vel_o[:, :-1]
    accel = jnp.sum(((acc_o - acc_t) ** 2) * chan_mask) / (b * (t - 2) * n_chan)
    loss = recons + 0.02 * commit + velocity + accel
    metrics = {'recons_loss': recons, 'commit_loss': commit,
               'velocity_loss': velocity, 'acceleration_loss': accel}
    return loss, metrics


def sep_vqvae_forward(x, params):
    """Mirrors SepVQVAER.forward: (xout(b,t,c), loss_down, [metrics_up, metrics_down])."""
    b, t, c = x.shape
    n = b * t

    # Up/down split, VQ, decode, and re-merge are all folded into one fused
    # kernel (joint permutation lives in the weights); no gather/scatter slabs.
    xo_flat, commit_up, commit_down = fused_vqvae(
        x.reshape(n, c), _fuse_params(params))
    x_out = xo_flat.reshape(b, t, c)   # already in original 24x3 joint order

    up_mask = jnp.asarray(_UP_MASK)
    down_mask = 1.0 - up_mask

    loss_up, metrics_up = branch_losses(x, x_out, up_mask, C_UP, commit_up)
    loss_down, metrics_down = branch_losses(x, x_out, down_mask, C_DOWN, commit_down)
    del loss_up  # only loss_down is returned, as in the reference

    metrics_up = dict(metrics_up)
    metrics_up['velocity_loss'] = metrics_up['velocity_loss'] * 0.0
    metrics_up['acceleration_loss'] = metrics_up['acceleration_loss'] * 0.0

    return x_out, loss_down, [metrics_up, metrics_down]


def init_params(key):
    def branch(k, cin):
        k1, k2, k3 = jax.random.split(k, 3)
        wenc = jax.random.normal(k1, (cin, EMB), jnp.float32) / jnp.sqrt(float(cin))
        cb = jax.random.normal(k2, (KCODES, EMB), jnp.float32) * 0.5
        wdec = jax.random.normal(k3, (EMB, cin), jnp.float32) / jnp.sqrt(float(EMB))
        return (wenc, cb, wdec)
    ku, kd = jax.random.split(key)
    return {'up': branch(ku, C_UP), 'down': branch(kd, C_DOWN)}


if __name__ == "__main__":
    key = jax.random.PRNGKey(0)
    kx, kp = jax.random.split(key)
    b, t = 2, 16
    x = jax.random.normal(kx, (b, t, N_JOINTS * JOINT_CHANNEL), jnp.float32)
    params = init_params(kp)

    fwd = jax.jit(sep_vqvae_forward)
    xout, loss_down, metrics = fwd(x, params)
    jax.block_until_ready(xout)
    jax.block_until_ready(loss_down)
    jax.block_until_ready(metrics)

    assert xout.shape == (b, t, N_JOINTS * JOINT_CHANNEL)
    assert xout.dtype == jnp.float32
    assert bool(jnp.isfinite(loss_down))
    assert bool(jnp.all(jnp.isfinite(xout)))
    assert float(metrics[0]['velocity_loss']) == 0.0
    assert float(metrics[0]['acceleration_loss']) == 0.0
    print("KERNEL_OK")
</pallas_src>

<mosaic_0001>
module attributes {stable_mosaic.version = 11 : i64} {
  func.func @_fused_vq_kernel(%arg0: i32, %arg1: memref<32x128xbf16, #tpu.memory_space<vmem>>, %arg2: memref<128x256xbf16, #tpu.memory_space<vmem>>, %arg3: memref<1x128xf32, #tpu.memory_space<vmem>>, %arg4: memref<128x128xbf16, #tpu.memory_space<vmem>>, %arg5: memref<32x128xbf16, #tpu.memory_space<vmem>>, %arg6: memref<1x8x128xf32, #tpu.memory_space<vmem>>) attributes {dimension_semantics = [#tpu.dimension_semantics<parallel>], iteration_bounds = array<i64: 1>, scalar_prefetch = 0 : i64, scratch_operands = 0 : i64, tpu.core_type = #tpu.core_type<tc>, window_params = [{transform_indices = @transform_0, window_bounds = array<i64: 32, 128>}, {pipeline_mode = #tpu.pipeline_mode<synchronous>, transform_indices = @transform_1, window_bounds = array<i64: 128, 256>}, {pipeline_mode = #tpu.pipeline_mode<synchronous>, transform_indices = @transform_2, window_bounds = array<i64: 1, 128>}, {pipeline_mode = #tpu.pipeline_mode<synchronous>, transform_indices = @transform_3, window_bounds = array<i64: 128, 128>}, {transform_indices = @transform_4, window_bounds = array<i64: 32, 128>}, {transform_indices = @transform_5, window_bounds = array<i64: 1, 8, 128>}]} {
    %c0 = arith.constant 0 : index
    %c0_0 = arith.constant 0 : index
    %0 = vector.load %arg1[%c0, %c0_0] : memref<32x128xbf16, #tpu.memory_space<vmem>>, vector<32x128xbf16>
    %c0_1 = arith.constant 0 : index
    %c0_2 = arith.constant 0 : index
    %1 = vector.load %arg2[%c0_1, %c0_2] : memref<128x256xbf16, #tpu.memory_space<vmem>>, vector<128x256xbf16>
    %cst = arith.constant dense<0.000000e+00> : vector<32x256xf32>
    %2 = tpu.matmul %0, %1, %cst {dimension_numbers = #tpu.dot_dimension_numbers<[1], [0], [0], [1], [0, 0, 1, 1], [], []>} : vector<32x128xbf16>, vector<128x256xbf16>, vector<32x256xf32> -> vector<32x256xf32>
    %3 = vector.extract_strided_slice %2 {offsets = [0, 0], sizes = [32, 128], strides = [1, 1]} : vector<32x256xf32> to vector<32x128xf32>
    %4 = vector.extract_strided_slice %2 {offsets = [0, 128], sizes = [32, 128], strides = [1, 1]} : vector<32x256xf32> to vector<32x128xf32>
    %c0_3 = arith.constant 0 : index
    %c0_4 = arith.constant 0 : index
    %5 = vector.load %arg3[%c0_3, %c0_4] : memref<1x128xf32, #tpu.memory_space<vmem>>, vector<1x128xf32>
    %6 = vector.broadcast %5 : vector<1x128xf32> to vector<32x128xf32>
    %7 = arith.addf %3, %6 : vector<32x128xf32>
    %8 = tpu.iota {dimensions = array<i32: 1>} : vector<32x128xi32>
    %c64_i32 = arith.constant 64 : i32
    %9 = vector.broadcast %c64_i32 : i32 to vector<32x128xi32>
    %10 = arith.cmpi slt, %8, %9 : vector<32x128xi32>
    %cst_5 = arith.constant 0x7F800000 : f32
    %11 = vector.broadcast %cst_5 : f32 to vector<32x128xf32>
    %12 = arith.select %10, %7, %11 : vector<32x128xi1>, vector<32x128xf32>
    %cst_6 = arith.constant 0x7F800000 : f32
    %13 = vector.broadcast %cst_6 : f32 to vector<32x128xf32>
    %14 = arith.select %10, %13, %7 : vector<32x128xi1>, vector<32x128xf32>
    %cst_7 = arith.constant dense<0x7F800000> : vector<32xf32>
    %15 = vector.multi_reduction <minimumf>, %12, %cst_7 [1] : vector<32x128xf32> to vector<32xf32>
    %16 = vector.shape_cast %15 : vector<32xf32> to vector<32x1xf32>
    %cst_8 = arith.constant dense<0x7F800000> : vector<32xf32>
    %17 = vector.multi_reduction <minimumf>, %14, %cst_8 [1] : vector<32x128xf32> to vector<32xf32>
    %18 = vector.shape_cast %17 : vector<32xf32> to vector<32x1xf32>
    %19 = vector.broadcast %16 : vector<32x1xf32> to vector<32x128xf32>
    %20 = arith.cmpf ole, %12, %19 : vector<32x128xf32>
    %c128_i32 = arith.constant 128 : i32
    %21 = vector.broadcast %c128_i32 : i32 to vector<32x128xi32>
    %22 = arith.select %20, %8, %21 : vector<32x128xi1>, vector<32x128xi32>
    %cst_9 = arith.constant dense<2147483647> : vector<32xi32>
    %23 = vector.multi_reduction <minsi>, %22, %cst_9 [1] : vector<32x128xi32> to vector<32xi32>
    %24 = vector.shape_cast %23 : vector<32xi32> to vector<32x1xi32>
    %25 = vector.broadcast %18 : vector<32x1xf32> to vector<32x128xf32>
    %26 = arith.cmpf ole, %14, %25 : vector<32x128xf32>
    %c128_i32_10 = arith.constant 128 : i32
    %27 = vector.broadcast %c128_i32_10 : i32 to vector<32x128xi32>
    %28 = arith.select %26, %8, %27 : vector<32x128xi1>, vector<32x128xi32>
    %cst_11 = arith.constant dense<2147483647> : vector<32xi32>
    %29 = vector.multi_reduction <minsi>, %28, %cst_11 [1] : vector<32x128xi32> to vector<32xi32>
    %30 = vector.shape_cast %29 : vector<32xi32> to vector<32x1xi32>
    %31 = vector.broadcast %24 : vector<32x1xi32> to vector<32x128xi32>
    %32 = arith.cmpi eq, %8, %31 : vector<32x128xi32>
    %33 = vector.broadcast %30 : vector<32x1xi32> to vector<32x128xi32>
    %34 = arith.cmpi eq, %8, %33 : vector<32x128xi32>
    %35 = arith.ori %32, %34 : vector<32x128xi1>
    %36 = arith.extui %35 : vector<32x128xi1> to vector<32x128xi32>
    %37 = arith.sitofp %36 : vector<32x128xi32> to vector<32x128xf32>
    %38 = arith.truncf %37 : vector<32x128xf32> to vector<32x128xbf16>
    %c0_12 = arith.constant 0 : index
    %c0_13 = arith.constant 0 : index
    %39 = vector.load %arg4[%c0_12, %c0_13] : memref<128x128xbf16, #tpu.memory_space<vmem>>, vector<128x128xbf16>
    %cst_14 = arith.constant dense<0.000000e+00> : vector<32x128xf32>
    %40 = tpu.matmul %38, %39, %cst_14 {dimension_numbers = #tpu.dot_dimension_numbers<[1], [0], [0], [1], [0, 0, 1, 1], [], []>} : vector<32x128xbf16>, vector<128x128xbf16>, vector<32x128xf32> -> vector<32x128xf32>
    %41 = arith.truncf %40 : vector<32x128xf32> to vector<32x128xbf16>
    %c0_15 = arith.constant 0 : index
    %c0_16 = arith.constant 0 : index
    %42 = vector.load %arg5[%c0_15, %c0_16] : memref<32x128xbf16, #tpu.memory_space<vmem>>, vector<32x128xbf16>
    tpu.vector_store %arg5[%c0_15, %c0_16], %41 {strides = array<i32>} : memref<32x128xbf16, #tpu.memory_space<vmem>>, vector<32x128xbf16>,
    %43 = arith.mulf %4, %4 : vector<32x128xf32>
    %44 = tpu.iota {dimensions = array<i32: 1>} : vector<32x128xi32>
    %c32_i32 = arith.constant 32 : i32
    %45 = vector.broadcast %c32_i32 : i32 to vector<32x128xi32>
    %46 = arith.cmpi slt, %44, %45 : vector<32x128xi32>
    %cst_17 = arith.constant 0.000000e+00 : f32
    %47 = vector.broadcast %cst_17 : f32 to vector<32x128xf32>
    %48 = arith.select %46, %43, %47 : vector<32x128xi1>, vector<32x128xf32>
    %49 = vector.shape_cast %48 : vector<32x128xf32> to vector<1x32x128xf32>
    %cst_18 = arith.constant dense<0.000000e+00> : vector<1xf32>
    %50 = vector.multi_reduction <add>, %49, %cst_18 [1, 2] : vector<1x32x128xf32> to vector<1xf32>
    %51 = vector.shape_cast %50 : vector<1xf32> to vector<1x1x1xf32>
    %52 = vector.extract %51[0, 0, 0] : f32 from vector<1x1x1xf32>
    %53 = vector.shape_cast %16 : vector<32x1xf32> to vector<1x32x1xf32>
    %cst_19 = arith.constant dense<0.000000e+00> : vector<1xf32>
    %54 = vector.multi_reduction <add>, %53, %cst_19 [1, 2] : vector<1x32x1xf32> to vector<1xf32>
    %55 = vector.shape_cast %54 : vector<1xf32> to vector<1x1x1xf32>
    %56 = vector.extract %55[0, 0, 0] : f32 from vector<1x1x1xf32>
    %57 = arith.addf %52, %56 : f32
    %c32_i32_20 = arith.constant 32 : i32
    %58 = vector.broadcast %c32_i32_20 : i32 to vector<32x128xi32>
    %59 = arith.cmpi sge, %44, %58 : vector<32x128xi32>
    %cst_21 = arith.constant 0.000000e+00 : f32
    %60 = vector.broadcast %cst_21 : f32 to vector<32x128xf32>
    %61 = arith.select %59, %43, %60 : vector<32x128xi1>, vector<32x128xf32>
    %62 = vector.shape_cast %61 : vector<32x128xf32> to vector<1x32x128xf32>
    %cst_22 = arith.constant dense<0.000000e+00> : vector<1xf32>
    %63 = vector.multi_reduction <add>, %62, %cst_22 [1, 2] : vector<1x32x128xf32> to vector<1xf32>
    %64 = vector.shape_cast %63 : vector<1xf32> to vector<1x1x1xf32>
    %65 = vector.extract %64[0, 0, 0] : f32 from vector<1x1x1xf32>
    %66 = vector.shape_cast %18 : vector<32x1xf32> to vector<1x32x1xf32>
    %cst_23 = arith.constant dense<0.000000e+00> : vector<1xf32>
    %67 = vector.multi_reduction <add>, %66, %cst_23 [1, 2] : vector<1x32x1xf32> to vector<1xf32>
    %68 = vector.shape_cast %67 : vector<1xf32> to vector<1x1x1xf32>
    %69 = vector.extract %68[0, 0, 0] : f32 from vector<1x1x1xf32>
    %70 = arith.addf %65, %69 : f32
    %71 = tpu.iota {dimensions = array<i32: 2>} : vector<1x8x128xi32>
    %c64_i32_24 = arith.constant 64 : i32
    %72 = vector.broadcast %c64_i32_24 : i32 to vector<1x8x128xi32>
    %73 = arith.cmpi slt, %71, %72 : vector<1x8x128xi32>
    %74 = vector.broadcast %57 : f32 to vector<1x8x128xf32>
    %75 = vector.broadcast %70 : f32 to vector<1x8x128xf32>
    %76 = arith.select %73, %74, %75 : vector<1x8x128xi1>, vector<1x8x128xf32>
    %c0_25 = arith.constant 0 : index
    %c0_26 = arith.constant 0 : index
    %c0_27 = arith.constant 0 : index
    %77 = vector.load %arg6[%c0_25, %c0_26, %c0_27] : memref<1x8x128xf32, #tpu.memory_space<vmem>>, vector<1x8x128xf32>
    tpu.vector_store %arg6[%c0_25, %c0_26, %c0_27], %76 {strides = array<i32>} : memref<1x8x128xf32, #tpu.memory_space<vmem>>, vector<1x8x128xf32>,
    return
  }
  func.func @transform_0(%arg0: i32) -> (i32, i32) {
    %c0_i32 = arith.constant 0 : i32
    %c0_i32_0 = arith.constant 0 : i32
    return %arg0, %c0_i32 : i32, i32
  }
  func.func @transform_1(%arg0: i32) -> (i32, i32) {
    %c0_i32 = arith.constant 0 : i32
    %c0_i32_0 = arith.constant 0 : i32
    %c0_i32_1 = arith.constant 0 : i32
    return %c0_i32, %c0_i32_0 : i32, i32
  }
  func.func @transform_2(%arg0: i32) -> (i32, i32) {
    %c0_i32 = arith.constant 0 : i32
    %c0_i32_0 = arith.constant 0 : i32
    %c0_i32_1 = arith.constant 0 : i32
    return %c0_i32, %c0_i32_0 : i32, i32
  }
  func.func @transform_3(%arg0: i32) -> (i32, i32) {
    %c0_i32 = arith.constant 0 : i32
    %c0_i32_0 = arith.constant 0 : i32
    %c0_i32_1 = arith.constant 0 : i32
    return %c0_i32, %c0_i32_0 : i32, i32
  }
  func.func @transform_4(%arg0: i32) -> (i32, i32) {
    %c0_i32 = arith.constant 0 : i32
    %c0_i32_0 = arith.constant 0 : i32
    return %arg0, %c0_i32 : i32, i32
  }
  func.func @transform_5(%arg0: i32) -> (i32, i32, i32) {
    %c0_i32 = arith.constant 0 : i32
    %c0_i32_0 = arith.constant 0 : i32
    %c0_i32_1 = arith.constant 0 : i32
    return %arg0, %c0_i32, %c0_i32_0 : i32, i32, i32
  }
}

</mosaic_0001>

<llo_original>
// kernel: sep_vqvae_forward.1
$region0: #{sep_vqvae_forward.1}
  #allocation0 [shape = 'u32[]', space=smem, size = 0x4, offset = 0x4, fixed_abs, tag = 'smem constant byte address 0x4 - core index']
  #allocation1 [shape = 'u32[72,128]{1,0:T(1,128)}', space=vmem, size = 0x9000, scoped, tag = 'internal scratch']
  %s0 = inlined_call_operand.vmem [shape: bf16[32,128], index: 0, kind: input, shape index: {}]
  %s1 = inlined_call_operand.vmem [shape: bf16[128,256], index: 1, kind: input, shape index: {}]
  %s2 = inlined_call_operand.vmem [shape: f32[1,128], index: 2, kind: input, shape index: {}]
  %s3 = inlined_call_operand.vmem [shape: bf16[128,128], index: 3, kind: input, shape index: {}]
  %s4 = inlined_call_operand.vmem [shape: bf16[32,128], index: 4, kind: output, shape index: {0}]
  %s5 = inlined_call_operand.vmem [shape: f32[1,8,128], index: 5, kind: output, shape index: {1}]
  %6 = xla_tuple %s4, %s5
  %s7 = sld [smem:[#allocation0]]
  $region34: #{sep_vqvae_forward.1} parent=0
    _
  %s9 = ssub.s32 1, %s7
  %s10 = scalar_select 0, %s9, %s7
  // Predicated region
  $region2: #{sep_vqvae_forward.1} parent=0 // pred_check
    _
  $region3: #{sep_vqvae_forward.1} parent=0 // pred_check_branch
    %12 = sbr.rel (0) target = $region5
  $region4: #{sep_vqvae_forward.1} parent=0 // pred_region
    _
  $region5: #{sep_vqvae_forward.1} parent=0 // pred_fallthru
    _
  // Predicated region
  $region6: #{sep_vqvae_forward.1} parent=0 // pred_check
    _
  $region7: #{sep_vqvae_forward.1} parent=0 // pred_check_branch
    %14 = sbr.rel (0) target = $region9
  $region8: #{sep_vqvae_forward.1} parent=0 // pred_region
    _
  $region9: #{sep_vqvae_forward.1} parent=0 // pred_fallthru
    _
  // Predicated region
  $region10: #{sep_vqvae_forward.1} parent=0 // pred_check
    _
  $region11: #{sep_vqvae_forward.1} parent=0 // pred_check_branch
    %16 = sbr.rel (0) target = $region13
  $region12: #{sep_vqvae_forward.1} parent=0 // pred_region
    _
  $region13: #{sep_vqvae_forward.1} parent=0 // pred_fallthru
    _
  // Predicated region
  $region14: #{sep_vqvae_forward.1} parent=0 // pred_check
    _
  $region15: #{sep_vqvae_forward.1} parent=0 // pred_check_branch
    %18 = sbr.rel (0) target = $region17
  $region16: #{sep_vqvae_forward.1} parent=0 // pred_region
    _
  $region17: #{sep_vqvae_forward.1} parent=0 // pred_fallthru
    _
  %v19 = vld [vmem:[%s0] sm:$0xf]
  %v20 = vld [vmem:[%s0 + $0x4] sm:$0xf]
  %v21 = vld [vmem:[%s0 + $0x8] sm:$0xf]
  %v22 = vld [vmem:[%s0 + $0xc] sm:$0xf]
  %v23 = vld [vmem:[%s1] sm:$0xff]
  %v24 = vld [vmem:[%s1 + $0x8] sm:$0xff]
  %v25 = vld [vmem:[%s1 + $0x10] sm:$0xff]
  %v26 = vld [vmem:[%s1 + $0x18] sm:$0xff]
  %v27 = vld [vmem:[%s1 + $0x20] sm:$0xff]
  %v28 = vld [vmem:[%s1 + $0x28] sm:$0xff]
  %v29 = vld [vmem:[%s1 + $0x30] sm:$0xff]
  %v30 = vld [vmem:[%s1 + $0x38] sm:$0xff]
  %v31 = vld [vmem:[%s1 + $0x40] sm:$0xff]
  %v32 = vld [vmem:[%s1 + $0x48] sm:$0xff]
  %v33 = vld [vmem:[%s1 + $0x50] sm:$0xff]
  %v34 = vld [vmem:[%s1 + $0x58] sm:$0xff]
  %v35 = vld [vmem:[%s1 + $0x60] sm:$0xff]
  %v36 = vld [vmem:[%s1 + $0x68] sm:$0xff]
  %v37 = vld [vmem:[%s1 + $0x70] sm:$0xff]
  %v38 = vld [vmem:[%s1 + $0x78] sm:$0xff]
  %v43 = vunpack.c.l.b16 %v19
  %v44 = vunpack.c.l.b16 %v20
  %v45 = vunpack.c.l.b16 %v21
  %v46 = vunpack.c.l.b16 %v22
  %v47 = vpack.c.b16 %v44, %v43
  %v48 = vpack.c.b16 %v46, %v45
  %v67 = vunpack.c.l.b16 %v23
  %v68 = vunpack.c.h.b16 %v23
  %v69 = vunpack.c.l.b16 %v24
  %v70 = vunpack.c.h.b16 %v24
  %v71 = vunpack.c.l.b16 %v25
  %v72 = vunpack.c.h.b16 %v25
  %v73 = vunpack.c.l.b16 %v26
  %v74 = vunpack.c.h.b16 %v26
  %v75 = vunpack.c.l.b16 %v27
  %v76 = vunpack.c.h.b16 %v27
  %v77 = vunpack.c.l.b16 %v28
  %v78 = vunpack.c.h.b16 %v28
  %v79 = vunpack.c.l.b16 %v29
  %v80 = vunpack.c.h.b16 %v29
  %v81 = vunpack.c.l.b16 %v30
  %v82 = vunpack.c.h.b16 %v30
  %v83 = vunpack.c.l.b16 %v31
  %v84 = vunpack.c.h.b16 %v31
  %v85 = vunpack.c.l.b16 %v32
  %v86 = vunpack.c.h.b16 %v32
  %v87 = vunpack.c.l.b16 %v33
  %v88 = vunpack.c.h.b16 %v33
  %v89 = vunpack.c.l.b16 %v34
  %v90 = vunpack.c.h.b16 %v34
  %v91 = vunpack.c.l.b16 %v35
  %v92 = vunpack.c.h.b16 %v35
  %v93 = vunpack.c.l.b16 %v36
  %v94 = vunpack.c.h.b16 %v36
  %v95 = vunpack.c.l.b16 %v37
  %v96 = vunpack.c.h.b16 %v37
  %v97 = vunpack.c.l.b16 %v38
  %v98 = vunpack.c.h.b16 %v38
  %v99 = vpack.c.b16 %v69, %v67
  %v100 = vpack.c.b16 %v70, %v68
  %v101 = vpack.c.b16 %v73, %v71
  %v102 = vpack.c.b16 %v74, %v72
  %v103 = vpack.c.b16 %v77, %v75
  %v104 = vpack.c.b16 %v78, %v76
  %v105 = vpack.c.b16 %v81, %v79
  %v106 = vpack.c.b16 %v82, %v80
  %v107 = vpack.c.b16 %v85, %v83
  %v108 = vpack.c.b16 %v86, %v84
  %v109 = vpack.c.b16 %v89, %v87
  %v110 = vpack.c.b16 %v90, %v88
  %v111 = vpack.c.b16 %v93, %v91
  %v112 = vpack.c.b16 %v94, %v92
  %v113 = vpack.c.b16 %v97, %v95
  %v114 = vpack.c.b16 %v98, %v96
  %131 = vmatpush.bf16.msra.mxu0 %v113
  %132 = vmatpush.bf16.msra.mxu0 %v111
  %133 = vmatpush.bf16.msra.mxu0 %v109
  %134 = vmatpush.bf16.msra.mxu0 %v107
  %135 = vmatpush.bf16.msra.mxu0 %v105
  %136 = vmatpush.bf16.msra.mxu0 %v103
  %137 = vmatpush.bf16.msra.mxu0 %v101
  %138 = vmatpush.bf16.msra.mxu0 %v99
  %139 = vmatmul.bf16.gmra.mxu0 %v47
  %v140 = vpop.f32.mrf.mxu0
  %v141 = vadd.f32 0.0, %v140
  %v142 = vpop.f32.mrf.mxu0
  %v143 = vadd.f32 0.0, %v142
  %144 = vmatmul.bf16.gmra.mxu0 %v48
  %v145 = vpop.f32.mrf.mxu0
  %v146 = vadd.f32 0.0, %v145
  %v147 = vpop.f32.mrf.mxu0
  %v148 = vadd.f32 0.0, %v147
  %149 = vdwg.mxu0
  %150 = vmatpush.bf16.msra.mxu0 %v114
  %151 = vmatpush.bf16.msra.mxu0 %v112
  %152 = vmatpush.bf16.msra.mxu0 %v110
  %153 = vmatpush.bf16.msra.mxu0 %v108
  %154 = vmatpush.bf16.msra.mxu0 %v106
  %155 = vmatpush.bf16.msra.mxu0 %v104
  %156 = vmatpush.bf16.msra.mxu0 %v102
  %157 = vmatpush.bf16.msra.mxu0 %v100
  %158 = vmatmul.bf16.gmra.mxu0 %v47
  %v159 = vpop.f32.mrf.mxu0
  %v160 = vadd.f32 0.0, %v159
  %v161 = vpop.f32.mrf.mxu0
  %v162 = vadd.f32 0.0, %v161
  %163 = vmatmul.bf16.gmra.mxu0 %v48
  %v164 = vpop.f32.mrf.mxu0
  %v165 = vadd.f32 0.0, %v164
  %v166 = vpop.f32.mrf.mxu0
  %v167 = vadd.f32 0.0, %v166
  %168 = vdwg.mxu0
  %v169 = vld [vmem:[%s2] sm:$0x1]
  %v171 = vperm.slane %v169, 0
  %v173 = vadd.f32 %v141, %v171
  %v174 = vadd.f32 %v143, %v171
  %v175 = vadd.f32 %v146, %v171
  %v176 = vadd.f32 %v148, %v171
  %v177 = vlaneseq
  %v178 = vand.u32 %v177, 127
  %vm179 = vcmp.lt.s32.totalorder %v178, 64
  %v180 = vsel %vm179, %v173, inf
  %v181 = vsel %vm179, %v174, inf
  %v182 = vsel %vm179, %v175, inf
  %v183 = vsel %vm179, %v176, inf
  %v184 = vsel %vm179, inf, %v173
  %v185 = vsel %vm179, inf, %v174
  %v186 = vsel %vm179, inf, %v175
  %v187 = vsel %vm179, inf, %v176
  %188 = vmin.xlane.f32.xlu0 %v180
  %v189 = vpop.xlane.xlu0 %188
  %190 = vmin.xlane.f32.xlu0 %v181
  %v191 = vpop.xlane.xlu0 %190
  %192 = vmin.xlane.f32.xlu0 %v182
  %v193 = vpop.xlane.xlu0 %192
  %194 = vmin.xlane.f32.xlu0 %v183
  %v195 = vpop.xlane.xlu0 %194
  %196 = vmin.xlane.f32.xlu0 %v184
  %v197 = vpop.xlane.xlu0 %196
  %198 = vmin.xlane.f32.xlu0 %v185
  %v199 = vpop.xlane.xlu0 %198
  %200 = vmin.xlane.f32.xlu0 %v186
  %v201 = vpop.xlane.xlu0 %200
  %202 = vmin.xlane.f32.xlu0 %v187
  %v203 = vpop.xlane.xlu0 %202
  %vm204 = vcmp.le.f32.partialorder %v180, %v189
  %vm205 = vcmp.le.f32.partialorder %v181, %v191
  %vm206 = vcmp.le.f32.partialorder %v182, %v193
  %vm207 = vcmp.le.f32.partialorder %v183, %v195
  %v208 = vsel %vm204, %v178, 128
  %v209 = vsel %vm205, %v178, 128
  %v210 = vsel %vm206, %v178, 128
  %v211 = vsel %vm207, %v178, 128
  %v212 = vand.u32 %v208, 65535
  %v213 = vshra.s32 %v208, 16
  %v214 = vcvt.s32.f32 %v212
  %v215 = vcvt.s32.f32 %v213
  %216 = vmin.xlane.f32.xlu0 %v215
  %v217 = vpop.xlane.xlu0 %216
  %vm218 = vcmp.eq.f32.partialorder %v215, %v217
  %v219 = vsel %vm218, %v214, inf
  %220 = vmin.xlane.f32.xlu0 %v219
  %v221 = vpop.xlane.xlu0 %220
  %v222 = vcvt.f32.s32 %v221
  %v223 = vcvt.f32.s32 %v217
  %v224 = vshll.u32 %v223, 16
  %v225 = vadd.s32 %v224, %v222
  %v226 = vand.u32 %v209, 65535
  %v227 = vshra.s32 %v209, 16
  %v228 = vcvt.s32.f32 %v226
  %v229 = vcvt.s32.f32 %v227
  %230 = vmin.xlane.f32.xlu0 %v229
  %v231 = vpop.xlane.xlu0 %230
  %vm232 = vcmp.eq.f32.partialorder %v229, %v231
  %v233 = vsel %vm232, %v228, inf
  %234 = vmin.xlane.f32.xlu0 %v233
  %v235 = vpop.xlane.xlu0 %234
  %v236 = vcvt.f32.s32 %v235
  %v237 = vcvt.f32.s32 %v231
  %v238 = vshll.u32 %v237, 16
  %v239 = vadd.s32 %v238, %v236
  %v240 = vand.u32 %v210, 65535
  %v241 = vshra.s32 %v210, 16
  %v242 = vcvt.s32.f32 %v240
  %v243 = vcvt.s32.f32 %v241
  %244 = vmin.xlane.f32.xlu0 %v243
  %v245 = vpop.xlane.xlu0 %244
  %vm246 = vcmp.eq.f32.partialorder %v243, %v245
  %v247 = vsel %vm246, %v242, inf
  %248 = vmin.xlane.f32.xlu0 %v247
  %v249 = vpop.xlane.xlu0 %248
  %v250 = vcvt.f32.s32 %v249
  %v251 = vcvt.f32.s32 %v245
  %v252 = vshll.u32 %v251, 16
  %v253 = vadd.s32 %v252, %v250
  %v254 = vand.u32 %v211, 65535
  %v255 = vshra.s32 %v211, 16
  %v256 = vcvt.s32.f32 %v254
  %v257 = vcvt.s32.f32 %v255
  %258 = vmin.xlane.f32.xlu0 %v257
  %v259 = vpop.xlane.xlu0 %258
  %vm260 = vcmp.eq.f32.partialorder %v257, %v259
  %v261 = vsel %vm260, %v256, inf
  %262 = vmin.xlane.f32.xlu0 %v261
  %v263 = vpop.xlane.xlu0 %262
  %v264 = vcvt.f32.s32 %v263
  %v265 = vcvt.f32.s32 %v259
  %v266 = vshll.u32 %v265, 16
  %v267 = vadd.s32 %v266, %v264
  %vm268 = vcmp.le.f32.partialorder %v184, %v197
  %vm269 = vcmp.le.f32.partialorder %v185, %v199
  %vm270 = vcmp.le.f32.partialorder %v186, %v201
  %vm271 = vcmp.le.f32.partialorder %v187, %v203
  %v272 = vsel %vm268, %v178, 128
  %v273 = vsel %vm269, %v178, 128
  %v274 = vsel %vm270, %v178, 128
  %v275 = vsel %vm271, %v178, 128
  %v276 = vand.u32 %v272, 65535
  %v277 = vshra.s32 %v272, 16
  %v278 = vcvt.s32.f32 %v276
  %v279 = vcvt.s32.f32 %v277
  %280 = vmin.xlane.f32.xlu0 %v279
  %v281 = vpop.xlane.xlu0 %280
  %vm282 = vcmp.eq.f32.partialorder %v279, %v281
  %v283 = vsel %vm282, %v278, inf
  %284 = vmin.xlane.f32.xlu0 %v283
  %v285 = vpop.xlane.xlu0 %284
  %v286 = vcvt.f32.s32 %v285
  %v287 = vcvt.f32.s32 %v281
  %v288 = vshll.u32 %v287, 16
  %v289 = vadd.s32 %v288, %v286
  %v290 = vand.u32 %v273, 65535
  %v291 = vshra.s32 %v273, 16
  %v292 = vcvt.s32.f32 %v290
  %v293 = vcvt.s32.f32 %v291
  %294 = vmin.xlane.f32.xlu0 %v293
  %v295 = vpop.xlane.xlu0 %294
  %vm296 = vcmp.eq.f32.partialorder %v293, %v295
  %v297 = vsel %vm296, %v292, inf
  %298 = vmin.xlane.f32.xlu0 %v297
  %v299 = vpop.xlane.xlu0 %298
  %v300 = vcvt.f32.s32 %v299
  %v301 = vcvt.f32.s32 %v295
  %v302 = vshll.u32 %v301, 16
  %v303 = vadd.s32 %v302, %v300
  %v304 = vand.u32 %v274, 65535
  %v305 = vshra.s32 %v274, 16
  %v306 = vcvt.s32.f32 %v304
  %v307 = vcvt.s32.f32 %v305
  %308 = vmin.xlane.f32.xlu0 %v307
  %v309 = vpop.xlane.xlu0 %308
  %vm310 = vcmp.eq.f32.partialorder %v307, %v309
  %v311 = vsel %vm310, %v306, inf
  %312 = vmin.xlane.f32.xlu0 %v311
  %v313 = vpop.xlane.xlu0 %312
  %v314 = vcvt.f32.s32 %v313
  %v315 = vcvt.f32.s32 %v309
  %v316 = vshll.u32 %v315, 16
  %v317 = vadd.s32 %v316, %v314
  %v318 = vand.u32 %v275, 65535
  %v319 = vshra.s32 %v275, 16
  %v320 = vcvt.s32.f32 %v318
  %v321 = vcvt.s32.f32 %v319
  %322 = vmin.xlane.f32.xlu0 %v321
  %v323 = vpop.xlane.xlu0 %322
  %vm324 = vcmp.eq.f32.partialorder %v321, %v323
  %v325 = vsel %vm324, %v320, inf
  %326 = vmin.xlane.f32.xlu0 %v325
  %v327 = vpop.xlane.xlu0 %326
  %v328 = vcvt.f32.s32 %v327
  %v329 = vcvt.f32.s32 %v323
  %v330 = vshll.u32 %v329, 16
  %v331 = vadd.s32 %v330, %v328
  %vm332 = vcmp.eq.s32.totalorder %v178, %v225
  %vm333 = vcmp.eq.s32.totalorder %v178, %v239
  %vm334 = vcmp.eq.s32.totalorder %v178, %v253
  %vm335 = vcmp.eq.s32.totalorder %v178, %v267
  %vm336 = vcmp.eq.s32.totalorder %v178, %v289
  %vm337 = vcmp.eq.s32.totalorder %v178, %v303
  %vm338 = vcmp.eq.s32.totalorder %v178, %v317
  %vm339 = vcmp.eq.s32.totalorder %v178, %v331
  %vm340 = vmor %vm332, %vm336
  %vm341 = vmor %vm333, %vm337
  %vm342 = vmor %vm334, %vm338
  %vm343 = vmor %vm335, %vm339
  %v344 = vsel %vm340, 1, 0
  %v345 = vsel %vm341, 1, 0
  %v346 = vsel %vm342, 1, 0
  %v347 = vsel %vm343, 1, 0
  %v348 = vcvt.s32.f32 %v344
  %v349 = vcvt.s32.f32 %v345
  %v350 = vcvt.s32.f32 %v346
  %v351 = vcvt.s32.f32 %v347
  %v352 = vpack.c.bf16 %v349, %v348
  %v353 = vpack.c.bf16 %v351, %v350
  %v354 = vld [vmem:[%s3] sm:$0xf]
  %v355 = vld [vmem:[%s3 + $0x4] sm:$0xf]
  %v356 = vld [vmem:[%s3 + $0x8] sm:$0xf]
  %v357 = vld [vmem:[%s3 + $0xc] sm:$0xf]
  %v358 = vld [vmem:[%s3 + $0x10] sm:$0xf]
  %v359 = vld [vmem:[%s3 + $0x14] sm:$0xf]
  %v360 = vld [vmem:[%s3 + $0x18] sm:$0xf]
  %v361 = vld [vmem:[%s3 + $0x1c] sm:$0xf]
  %v362 = vld [vmem:[%s3 + $0x20] sm:$0xf]
  %v363 = vld [vmem:[%s3 + $0x24] sm:$0xf]
  %v364 = vld [vmem:[%s3 + $0x28] sm:$0xf]
  %v365 = vld [vmem:[%s3 + $0x2c] sm:$0xf]
  %v366 = vld [vmem:[%s3 + $0x30] sm:$0xf]
  %v367 = vld [vmem:[%s3 + $0x34] sm:$0xf]
  %v368 = vld [vmem:[%s3 + $0x38] sm:$0xf]
  %v369 = vld [vmem:[%s3 + $0x3c] sm:$0xf]
  %v386 = vunpack.c.l.b16 %v354
  %v387 = vunpack.c.l.b16 %v355
  %v388 = vunpack.c.l.b16 %v356
  %v389 = vunpack.c.l.b16 %v357
  %v390 = vunpack.c.l.b16 %v358
  %v391 = vunpack.c.l.b16 %v359
  %v392 = vunpack.c.l.b16 %v360
  %v393 = vunpack.c.l.b16 %v361
  %v394 = vunpack.c.l.b16 %v362
  %v395 = vunpack.c.l.b16 %v363
  %v396 = vunpack.c.l.b16 %v364
  %v397 = vunpack.c.l.b16 %v365
  %v398 = vunpack.c.l.b16 %v366
  %v399 = vunpack.c.l.b16 %v367
  %v400 = vunpack.c.l.b16 %v368
  %v401 = vunpack.c.l.b16 %v369
  %v402 = vpack.c.b16 %v387, %v386
  %v403 = vpack.c.b16 %v389, %v388
  %v404 = vpack.c.b16 %v391, %v390
  %v405 = vpack.c.b16 %v393, %v392
  %v406 = vpack.c.b16 %v395, %v394
  %v407 = vpack.c.b16 %v397, %v396
  %v408 = vpack.c.b16 %v399, %v398
  %v409 = vpack.c.b16 %v401, %v400
  %418 = vmatpush.bf16.msra.mxu0 %v409
  %419 = vmatpush.bf16.msra.mxu0 %v408
  %420 = vmatpush.bf16.msra.mxu0 %v407
  %421 = vmatpush.bf16.msra.mxu0 %v406
  %422 = vmatpush.bf16.msra.mxu0 %v405
  %423 = vmatpush.bf16.msra.mxu0 %v404
  %424 = vmatpush.bf16.msra.mxu0 %v403
  %425 = vmatpush.bf16.msra.mxu0 %v402
  %426 = vmatmul.bf16.gmra.mxu0 %v352
  %v427 = vpop.f32.mrf.mxu0
  %v428 = vadd.f32 0.0, %v427
  %v429 = vpop.f32.mrf.mxu0
  %v430 = vadd.f32 0.0, %v429
  %431 = vmatmul.bf16.gmra.mxu0 %v353
  %v432 = vpop.f32.mrf.mxu0
  %v433 = vadd.f32 0.0, %v432
  %v434 = vpop.f32.mrf.mxu0
  %v435 = vadd.f32 0.0, %v434
  %436 = vdwg.mxu0
  %v437 = vpack.c.bf16 %v428, %v428
  %v438 = vpack.c.bf16 %v430, %v430
  %v439 = vpack.c.bf16 %v433, %v433
  %v440 = vpack.c.bf16 %v435, %v435
  %441 = vst [vmem:[%s4] sm:$0xf] %v437
  %442 = vst [vmem:[%s4 + $0x4] sm:$0xf] %v438
  %443 = vst [vmem:[%s4 + $0x8] sm:$0xf] %v439
  %444 = vst [vmem:[%s4 + $0xc] sm:$0xf] %v440
  %v445 = vmul.f32 %v160, %v160
  %v446 = vmul.f32 %v162, %v162
  %v447 = vmul.f32 %v165, %v165
  %v448 = vmul.f32 %v167, %v167
  %vm449 = vcmp.lt.s32.totalorder %v178, 32
  %v450 = vsel %vm449, %v445, 0.0
  %v451 = vsel %vm449, %v446, 0.0
  %v452 = vsel %vm449, %v447, 0.0
  %v453 = vsel %vm449, %v448, 0.0
  %v454 = vadd.f32 %v450, %v451
  %v455 = vadd.f32 %v454, %v452
  %v456 = vadd.f32 %v455, %v453
  %457 = vadd.xlane.f32.xlu0 %v456
  %v458 = vpop.xlane.xlu0 %457
  %v459 = vrot.slane %v458, 4
  %v460 = vadd.f32 %v458, %v459
  %v461 = vrot.slane %v460, 2
  %v462 = vadd.f32 %v460, %v461
  %v463 = vrot.slane %v462, 1
  %v464 = vadd.f32 %v462, %v463
  %s465 = vtos %v464
  %vm466 = vcmask 7168
  %v467 = vsel %vm466, %v189, 0.0
  %v468 = vsel %vm466, %v191, 0.0
  %v469 = vadd.f32 %v467, %v468
  %v470 = vsel %vm466, %v193, 0.0
  %v471 = vadd.f32 %v469, %v470
  %v472 = vsel %vm466, %v195, 0.0
  %v473 = vadd.f32 %v471, %v472
  %474 = vadd.xlane.f32.xlu0 %v473
  %v475 = vpop.xlane.xlu0 %474
  %v476 = vrot.slane %v475, 4
  %v477 = vadd.f32 %v475, %v476
  %v478 = vrot.slane %v477, 2
  %v479 = vadd.f32 %v477, %v478
  %v480 = vrot.slane %v479, 1
  %v481 = vadd.f32 %v479, %v480
  %s482 = vtos %v481
  %s483 = sadd.f32 %s465, %s482
  %vm484 = vcmp.ge.s32.totalorder %v178, 32
  %v485 = vsel %vm484, %v445, 0.0
  %v486 = vsel %vm484, %v446, 0.0
  %v487 = vsel %vm484, %v447, 0.0
  %v488 = vsel %vm484, %v448, 0.0
  %v489 = vadd.f32 %v485, %v486
  %v490 = vadd.f32 %v489, %v487
  %v491 = vadd.f32 %v490, %v488
  %492 = vadd.xlane.f32.xlu0 %v491
  %v493 = vpop.xlane.xlu0 %492
  %v494 = vrot.slane %v493, 4
  %v495 = vadd.f32 %v493, %v494
  %v496 = vrot.slane %v495, 2
  %v497 = vadd.f32 %v495, %v496
  %v498 = vrot.slane %v497, 1
  %v499 = vadd.f32 %v497, %v498
  %s500 = vtos %v499
  %v501 = vsel %vm466, %v197, 0.0
  %v502 = vsel %vm466, %v199, 0.0
  %v503 = vadd.f32 %v501, %v502
  %v504 = vsel %vm466, %v201, 0.0
  %v505 = vadd.f32 %v503, %v504
  %v506 = vsel %vm466, %v203, 0.0
  %v507 = vadd.f32 %v505, %v506
  %508 = vadd.xlane.f32.xlu0 %v507
  %v509 = vpop.xlane.xlu0 %508
  %v510 = vrot.slane %v509, 4
  %v511 = vadd.f32 %v509, %v510
  %v512 = vrot.slane %v511, 2
  %v513 = vadd.f32 %v511, %v512
  %v514 = vrot.slane %v513, 1
  %v515 = vadd.f32 %v513, %v514
  %s516 = vtos %v515
  %s517 = sadd.f32 %s500, %s516
  %v518 = vstv %s483
  %v519 = vstv %s517
  %v520 = vsel %vm179, %v518, %v519
  %521 = vst [vmem:[%s5] sm:$0xff] %v520
  // Predicated region
  $region18: #{sep_vqvae_forward.1} parent=0 // pred_check
    _
  $region19: #{sep_vqvae_forward.1} parent=0 // pred_check_branch
    %523 = sbr.rel (0) target = $region21
  $region20: #{sep_vqvae_forward.1} parent=0 // pred_region
    _
  $region21: #{sep_vqvae_forward.1} parent=0 // pred_fallthru
    _
  // Predicated region
  $region22: #{sep_vqvae_forward.1} parent=0 // pred_check
    _
  $region23: #{sep_vqvae_forward.1} parent=0 // pred_check_branch
    %525 = sbr.rel (0) target = $region25
  $region24: #{sep_vqvae_forward.1} parent=0 // pred_region
    _
  $region25: #{sep_vqvae_forward.1} parent=0 // pred_fallthru
    _
  // Predicated region
  $region26: #{sep_vqvae_forward.1} parent=0 // pred_check
    _
  $region27: #{sep_vqvae_forward.1} parent=0 // pred_check_branch
    %527 = sbr.rel (0) target = $region29
  $region28: #{sep_vqvae_forward.1} parent=0 // pred_region
    _
  $region29: #{sep_vqvae_forward.1} parent=0 // pred_fallthru
    _
  // Predicated region
  $region30: #{sep_vqvae_forward.1} parent=0 // pred_check
    _
  $region31: #{sep_vqvae_forward.1} parent=0 // pred_check_branch
    %529 = sbr.rel (0) target = $region33
  $region32: #{sep_vqvae_forward.1} parent=0 // pred_region
    _
  $region33: #{sep_vqvae_forward.1} parent=0 // pred_fallthru
    _

</llo_original>
